<compile_context>
chip_gen: v7x
topology: tpu7x:2x2x1
jax: 0.10.0
libtpu: 0.0.40
codegen_flags: <defaults>
</compile_context>

<pallas_src>
import jax
import jax.numpy as jnp
import numpy as np
from jax.experimental import pallas as pl
from jax.experimental.pallas import tpu as pltpu


def _round_up(x, m):
    return ((x + m - 1) // m) * m


# ----------------------------------------------------------------------------
# Kernel 1: fused ReLU + im2col-matmul + per-tile BN partial statistics.
# ----------------------------------------------------------------------------
def _relu_matmul_stats_kernel(p_ref, w_ref, y_ref, sum_ref, ssq_ref):
    # p_ref   : (TM, Kp)   im2col patch rows (pre-ReLU), bf16 or f32
    # w_ref   : (Kp, Cp)   flattened, zero-padded conv weight (resident)
    # y_ref   : (TM, Cp)   f32 conv output tile
    # sum_ref : (1, Cp)    per-tile sum   of y over rows (for BN mean)
    # ssq_ref : (1, Cp)    per-tile sum   of y*y over rows (for BN var)
    patch = jnp.maximum(p_ref[...], 0)                     # fused ReLU, VPU filler
    y = jnp.dot(patch, w_ref[...], preferred_element_type=jnp.float32)
    y_ref[...] = y
    sum_ref[...] = jnp.sum(y, axis=0, keepdims=True)
    ssq_ref[...] = jnp.sum(y * y, axis=0, keepdims=True)


# ----------------------------------------------------------------------------
# Kernel 2: BN apply — one multiply-add per element with per-channel scale/shift.
# ----------------------------------------------------------------------------
def _bn_apply_kernel(y_ref, scale_ref, shift_ref, o_ref):
    o_ref[...] = y_ref[...] * scale_ref[...] + shift_ref[...]


# ----------------------------------------------------------------------------
# Wrapper: layout / im2col / padding glue + two pallas_calls.
# ----------------------------------------------------------------------------
def relu_conv_bn(x_nchw, weight_oikk, gamma, beta, *, stride, padding,
                 eps=1e-5, bf16_matmul=True, block_m=256):
    """x_nchw: (N, C_in, H, W); weight_oikk: (C_out, C_in, KH, KW) (PyTorch layout)."""
    N, C_in, H, W = x_nchw.shape
    C_out, _, KH, KW = weight_oikk.shape
    HO = (H + 2 * padding - KH) // stride + 1
    WO = (W + 2 * padding - KW) // stride + 1
    M = N * HO * WO
    K = KH * KW * C_in

    LANE = 128
    Kp = _round_up(K, LANE)                     # pad K -> aligned, unmasked loads
    Cp = _round_up(C_out, LANE)                 # pad C_out -> lane-full epilogue/store
    TM = max(8, min(block_m, _round_up(M, 8)))  # M tile (v7x: bias this smaller)
    MP = _round_up(M, TM)
    nt = MP // TM

    mm_dtype = jnp.bfloat16 if bf16_matmul else jnp.float32
    itemsize = jnp.dtype(mm_dtype).itemsize

    # ---- XLA glue: NCHW->NHWC, spatial zero-pad, im2col, K/M padding --------
    x_nhwc = jnp.transpose(x_nchw, (0, 2, 3, 1)).astype(jnp.float32)
    x_pad = jnp.pad(x_nhwc, ((0, 0), (padding, padding), (padding, padding), (0, 0)))

    taps = []
    for kh in range(KH):
        for kw in range(KW):
            taps.append(x_pad[:, kh:kh + (HO - 1) * stride + 1:stride,
                                 kw:kw + (WO - 1) * stride + 1:stride, :])
    patches = jnp.concatenate(taps, axis=-1).reshape(M, K)      # (M, KH*KW*C_in)
    patches = jnp.pad(patches, ((0, MP - M), (0, Kp - K))).astype(mm_dtype)

    # (C_out, C_in, KH, KW) -> (KH, KW, C_in, C_out) -> (K, C_out) -> (Kp, Cp)
    w2d = jnp.transpose(weight_oikk, (2, 3, 1, 0)).reshape(K, C_out)
    w2d = jnp.pad(w2d.astype(jnp.float32),
                  ((0, Kp - K), (0, Cp - C_out))).astype(mm_dtype)

    # ---- Pass 1: ReLU + matmul + partial BN stats (pipelined over M tiles) --
    flops1 = 2 * MP * Kp * Cp + 3 * MP * Cp
    bytes1 = (MP * Kp + Kp * Cp) * itemsize + (MP * Cp + 2 * nt * Cp) * 4

    y, psum, pssq = pl.pallas_call(
        _relu_matmul_stats_kernel,
        grid=(nt,),
        in_specs=[
            pl.BlockSpec((TM, Kp), lambda i: (i, 0)),
            pl.BlockSpec((Kp, Cp), lambda i: (0, 0)),       # weight stays resident
        ],
        out_specs=(
            pl.BlockSpec((TM, Cp), lambda i: (i, 0)),
            pl.BlockSpec((None, 1, Cp), lambda i: (i, 0, 0)),
            pl.BlockSpec((None, 1, Cp), lambda i: (i, 0, 0)),
        ),
        out_shape=(
            jax.ShapeDtypeStruct((MP, Cp), jnp.float32),
            jax.ShapeDtypeStruct((nt, 1, Cp), jnp.float32),
            jax.ShapeDtypeStruct((nt, 1, Cp), jnp.float32),
        ),
        compiler_params=pltpu.CompilerParams(
            dimension_semantics=("parallel",),
            vmem_limit_bytes=32 * 1024 * 1024),
        cost_estimate=pl.CostEstimate(
            flops=flops1, transcendentals=0, bytes_accessed=bytes1),
    )(patches, w2d)

    # ---- Tiny glue: fold partial stats into per-channel scale / shift -------
    s = jnp.sum(psum[:, 0, :], axis=0)                       # (Cp,)
    ss = jnp.sum(pssq[:, 0, :], axis=0)
    mean = s / M                                             # padded rows are zero
    var = jnp.maximum(ss / M - mean * mean, 0.0)             # biased batch variance
    gamma_p = jnp.pad(gamma.astype(jnp.float32), (0, Cp - C_out))
    beta_p = jnp.pad(beta.astype(jnp.float32), (0, Cp - C_out))
    scale = (gamma_p * jax.lax.rsqrt(var + eps)).reshape(1, Cp)
    shift = (beta_p - mean.reshape(1, Cp)[0] * scale[0]).reshape(1, Cp)

    # ---- Pass 2: BN apply (cheap, memory-bound, pipelined over M tiles) -----
    out = pl.pallas_call(
        _bn_apply_kernel,
        grid=(nt,),
        in_specs=[
            pl.BlockSpec((TM, Cp), lambda i: (i, 0)),
            pl.BlockSpec((1, Cp), lambda i: (0, 0)),
            pl.BlockSpec((1, Cp), lambda i: (0, 0)),
        ],
        out_specs=pl.BlockSpec((TM, Cp), lambda i: (i, 0)),
        out_shape=jax.ShapeDtypeStruct((MP, Cp), jnp.float32),
        compiler_params=pltpu.CompilerParams(
            dimension_semantics=("parallel",),
            vmem_limit_bytes=32 * 1024 * 1024),
        cost_estimate=pl.CostEstimate(
            flops=2 * MP * Cp, transcendentals=0,
            bytes_accessed=2 * MP * Cp * 4 + 2 * Cp * 4),
    )(y, scale, shift)

    # ---- Un-pad, back to NCHW (PyTorch output convention) -------------------
    out_nhwc = out[:M, :C_out].reshape(N, HO, WO, C_out)
    return jnp.transpose(out_nhwc, (0, 3, 1, 2))


# ----------------------------------------------------------------------------
# Pure-JAX reference (correctness check only)
# ----------------------------------------------------------------------------
def _reference(x_nchw, weight_oikk, gamma, beta, *, stride, padding, eps=1e-5):
    h = jnp.maximum(x_nchw, 0.0)
    y = jax.lax.conv_general_dilated(
        h, weight_oikk,
        window_strides=(stride, stride),
        padding=((padding, padding), (padding, padding)),
        dimension_numbers=("NCHW", "OIHW", "NCHW"),
    )
    mean = jnp.mean(y, axis=(0, 2, 3), keepdims=True)
    var = jnp.mean((y - mean) ** 2, axis=(0, 2, 3), keepdims=True)
    g = gamma.reshape(1, -1, 1, 1)
    b = beta.reshape(1, -1, 1, 1)
    return (y - mean) * jax.lax.rsqrt(var + eps) * g + b


if __name__ == "__main__":
    # Typical ReLUConvBN hyper-params: C_in=8, C_out=16, 3x3, stride=1, pad=1.
    C_IN, C_OUT, KSIZE, STRIDE, PADDING = 8, 16, 3, 1, 1
    N, H, W = 2, 16, 16

    key = jax.random.PRNGKey(0)
    kx, kw, kg, kb = jax.random.split(key, 4)
    x = jax.random.normal(kx, (N, C_IN, H, W), jnp.float32)
    weight = 0.1 * jax.random.normal(kw, (C_OUT, C_IN, KSIZE, KSIZE), jnp.float32)
    gamma = 1.0 + 0.1 * jax.random.normal(kg, (C_OUT,), jnp.float32)
    beta = 0.1 * jax.random.normal(kb, (C_OUT,), jnp.float32)

    ref = _reference(x, weight, gamma, beta, stride=STRIDE, padding=PADDING)

    # f32 matmul operands: bit-tight against the f32 reference.
    out_f32 = relu_conv_bn(x, weight, gamma, beta, stride=STRIDE, padding=PADDING,
                           bf16_matmul=False)
    out_f32 = jax.block_until_ready(out_f32)
    np.testing.assert_allclose(np.asarray(out_f32), np.asarray(ref),
                               rtol=1e-4, atol=1e-4)

    # bf16 matmul operands (default fast path, f32 accumulation): looser tolerance.
    out_bf16 = relu_conv_bn(x, weight, gamma, beta, stride=STRIDE, padding=PADDING,
                            bf16_matmul=True)
    out_bf16 = jax.block_until_ready(out_bf16)
    np.testing.assert_allclose(np.asarray(out_bf16), np.asarray(ref),
                               rtol=2e-2, atol=2e-2)

    print("KERNEL_OK")
</pallas_src>

<mosaic_0001>
module attributes {stable_mosaic.version = 11 : i64} {
  func.func @_relu_matmul_stats_kernel(%arg0: i32, %arg1: memref<256x128xf32, #tpu.memory_space<vmem>>, %arg2: memref<128x128xf32, #tpu.memory_space<vmem>>, %arg3: memref<256x128xf32, #tpu.memory_space<vmem>>, %arg4: memref<1x1x128xf32, #tpu.memory_space<vmem>>, %arg5: memref<1x1x128xf32, #tpu.memory_space<vmem>>) attributes {dimension_semantics = [#tpu.dimension_semantics<parallel>], iteration_bounds = array<i64: 2>, scalar_prefetch = 0 : i64, scratch_operands = 0 : i64, tpu.core_type = #tpu.core_type<tc>, window_params = [{transform_indices = @transform_0, window_bounds = array<i64: 256, 128>}, {pipeline_mode = #tpu.pipeline_mode<synchronous>, transform_indices = @transform_1, window_bounds = array<i64: 128, 128>}, {transform_indices = @transform_2, window_bounds = array<i64: 256, 128>}, {transform_indices = @transform_3, window_bounds = array<i64: 1, 1, 128>}, {transform_indices = @transform_4, window_bounds = array<i64: 1, 1, 128>}]} {
    %c0 = arith.constant 0 : index
    %c0_0 = arith.constant 0 : index
    %0 = vector.load %arg1[%c0, %c0_0] : memref<256x128xf32, #tpu.memory_space<vmem>>, vector<256x128xf32>
    %cst = arith.constant 0.000000e+00 : f32
    %1 = vector.broadcast %cst : f32 to vector<256x128xf32>
    %2 = arith.maximumf %0, %1 : vector<256x128xf32>
    %c0_1 = arith.constant 0 : index
    %c0_2 = arith.constant 0 : index
    %3 = vector.load %arg2[%c0_1, %c0_2] : memref<128x128xf32, #tpu.memory_space<vmem>>, vector<128x128xf32>
    %cst_3 = arith.constant dense<0.000000e+00> : vector<256x128xf32>
    %4 = tpu.matmul %2, %3, %cst_3 {dimension_numbers = #tpu.dot_dimension_numbers<[1], [0], [0], [1], [0, 0, 1, 1], [], []>} : vector<256x128xf32>, vector<128x128xf32>, vector<256x128xf32> -> vector<256x128xf32>
    %c0_4 = arith.constant 0 : index
    %c0_5 = arith.constant 0 : index
    %5 = vector.load %arg3[%c0_4, %c0_5] : memref<256x128xf32, #tpu.memory_space<vmem>>, vector<256x128xf32>
    tpu.vector_store %arg3[%c0_4, %c0_5], %4 {strides = array<i32>} : memref<256x128xf32, #tpu.memory_space<vmem>>, vector<256x128xf32>,
    %cst_6 = arith.constant dense<0.000000e+00> : vector<128xf32>
    %6 = vector.multi_reduction <add>, %4, %cst_6 [0] : vector<256x128xf32> to vector<128xf32>
    %7 = vector.shape_cast %6 : vector<128xf32> to vector<1x128xf32>
    %c0_7 = arith.constant 0 : index
    %c0_8 = arith.constant 0 : index
    %c0_9 = arith.constant 0 : index
    %8 = vector.load %arg4[%c0_7, %c0_8, %c0_9] : memref<1x1x128xf32, #tpu.memory_space<vmem>>, vector<1x1x128xf32>
    %9 = vector.shape_cast %8 : vector<1x1x128xf32> to vector<1x128xf32>
    %10 = vector.shape_cast %7 : vector<1x128xf32> to vector<1x1x128xf32>
    tpu.vector_store %arg4[%c0_7, %c0_8, %c0_9], %10 {strides = array<i32>} : memref<1x1x128xf32, #tpu.memory_space<vmem>>, vector<1x1x128xf32>,
    %11 = arith.mulf %4, %4 : vector<256x128xf32>
    %cst_10 = arith.constant dense<0.000000e+00> : vector<128xf32>
    %12 = vector.multi_reduction <add>, %11, %cst_10 [0] : vector<256x128xf32> to vector<128xf32>
    %13 = vector.shape_cast %12 : vector<128xf32> to vector<1x128xf32>
    %c0_11 = arith.constant 0 : index
    %c0_12 = arith.constant 0 : index
    %c0_13 = arith.constant 0 : index
    %14 = vector.load %arg5[%c0_11, %c0_12, %c0_13] : memref<1x1x128xf32, #tpu.memory_space<vmem>>, vector<1x1x128xf32>
    %15 = vector.shape_cast %14 : vector<1x1x128xf32> to vector<1x128xf32>
    %16 = vector.shape_cast %13 : vector<1x128xf32> to vector<1x1x128xf32>
    tpu.vector_store %arg5[%c0_11, %c0_12, %c0_13], %16 {strides = array<i32>} : memref<1x1x128xf32, #tpu.memory_space<vmem>>, vector<1x1x128xf32>,
    return
  }
  func.func @transform_0(%arg0: i32) -> (i32, i32) {
    %c0_i32 = arith.constant 0 : i32
    %c0_i32_0 = arith.constant 0 : i32
    return %arg0, %c0_i32 : i32, i32
  }
  func.func @transform_1(%arg0: i32) -> (i32, i32) {
    %c0_i32 = arith.constant 0 : i32
    %c0_i32_0 = arith.constant 0 : i32
    %c0_i32_1 = arith.constant 0 : i32
    return %c0_i32, %c0_i32_0 : i32, i32
  }
  func.func @transform_2(%arg0: i32) -> (i32, i32) {
    %c0_i32 = arith.constant 0 : i32
    %c0_i32_0 = arith.constant 0 : i32
    return %arg0, %c0_i32 : i32, i32
  }
  func.func @transform_3(%arg0: i32) -> (i32, i32, i32) {
    %c0_i32 = arith.constant 0 : i32
    %c0_i32_0 = arith.constant 0 : i32
    %c0_i32_1 = arith.constant 0 : i32
    return %arg0, %c0_i32, %c0_i32_0 : i32, i32, i32
  }
  func.func @transform_4(%arg0: i32) -> (i32, i32, i32) {
    %c0_i32 = arith.constant 0 : i32
    %c0_i32_0 = arith.constant 0 : i32
    %c0_i32_1 = arith.constant 0 : i32
    return %arg0, %c0_i32, %c0_i32_0 : i32, i32, i32
  }
}

</mosaic_0001>

<llo_original>
// kernel: tpu_custom_call.1
$region0: #{tpu_custom_call.1}
  #allocation0 [shape = 'u32[]', space=smem, size = 0x4, offset = 0x4, fixed_abs, tag = 'smem constant byte address 0x4 - core index']
  #allocation1 [shape = 'u32[144,128]{1,0:T(1,128)}', space=vmem, size = 0x12000, scoped, tag = 'internal scratch']
  %s0 = inlined_call_operand.hbm [shape: f32[512,128], index: 0, kind: input, shape index: {}]
  %s1 = inlined_call_operand.hbm [shape: f32[128,128], index: 1, kind: input, shape index: {}]
  %s2 = inlined_call_operand.hbm [shape: f32[512,128], index: 2, kind: output, shape index: {0}]
  %s3 = inlined_call_operand.hbm [shape: f32[2,1,128], index: 3, kind: output, shape index: {1}]
  %s4 = inlined_call_operand.hbm [shape: f32[2,1,128], index: 4, kind: output, shape index: {2}]
  %5 = xla_tuple %s2, %s3, %s4
  %s6 = sld [smem:[#allocation0]]
  $region65: #{tpu_custom_call.1} parent=0
    _
  %s8 = ssub.s32 1, %s6
  %s9 = scalar_select 0, %s8, %s6
  $region1: #{tpu_custom_call.1} parent=0
    #allocation2 [shape = 'u8[262144]{0}', space=vmem, size = 0x40000, scoped, tag = 'input window, operand 0']
    #allocation3 [shape = 's32[2]{0}', space=sflag, size = 0x8, scoped, tag = 'scoped memory for tpu_custom_call.1']
    #allocation4 [shape = 's32[2]{0}', space=sflag, size = 0x8, scoped, tag = 'scoped memory for tpu_custom_call.1']
    #allocation5 [shape = 'u8[65536]{0}', space=vmem, size = 0x10000, scoped, tag = 'input window, operand 1, single buffered']
    #allocation6 [shape = 's32[1]{0}', space=sflag, size = 0x4, scoped, tag = 'scoped memory for tpu_custom_call.1']
    #allocation7 [shape = 'u8[262144]{0}', space=vmem, size = 0x40000, scoped, tag = 'output window, operand 0']
    #allocation8 [shape = 'u8[1024]{0}', space=vmem, size = 0x400, scoped, tag = 'output window, operand 1']
    #allocation9 [shape = 's32[2]{0}', space=sflag, size = 0x8, scoped, tag = 'scoped memory for tpu_custom_call.1']
    #allocation10 [shape = 'u8[1024]{0}', space=vmem, size = 0x400, scoped, tag = 'output window, operand 2']
    %10 = vsyncpa [#allocation3], 0
    %s11 = scalar_lea.sflag [#allocation3], 1
    %12 = vsyncpa %s11, 0
    %13 = vsyncpa [#allocation6], 0
    %14 = vsyncpa [#allocation4], 0
    %s15 = scalar_lea.sflag [#allocation4], 1
    %16 = vsyncpa %s15, 0
    %17 = vsyncpa [#allocation9], 0
    %s18 = scalar_lea.sflag [#allocation9], 1
    %19 = vsyncpa %s18, 0
    loop: start=0, step=1, limit=4
    $region2: #{tpu_custom_call.1} parent=1 // loop_pre_header
      _
    $region3: #{tpu_custom_call.1} parent=1 // loop_header
      %s21 = sphi 0, %s25
      %p22 = scmp.ge.s32.totalorder %s21, 4
      %s31 = sphi 0, %s33
      %s34 = sphi 0, %s31
      %s35 = sphi 0, %s34
      %s51 = sphi 0, %s35
      %s55 = sphi 0, %s55
      %s57 = sphi 0, %s55
      %s58 = sphi 0, %s57
      %s72 = sphi 0, %s58
      %s78 = sphi 0, %s80
      %s81 = sphi 0, %s78
      %s82 = sphi 0, %s81
      %s98 = sphi 0, %s82
      %s104 = sphi 0, %s106
      %s107 = sphi 0, %s104
      %s108 = sphi 0, %s107
      %s124 = sphi 0, %s108
      %s130 = sphi 0, %s132
      %s133 = sphi 0, %s130
      %s134 = sphi 0, %s133
      %s150 = sphi 0, %s134
    $region4: #{tpu_custom_call.1} parent=1 // loop_header_branch
      %24 = sbr.rel (%p22) target = $region8
    $region5: #{tpu_custom_call.1} parent=1 // loop_body
      %s26 = ssub.s32 %s21, 1
      %s27 = ssub.s32 %s21, 2
      %s28 = sadd.s32 %s21, 1
      %s29 = ssub.s32 %s21, %s28
      %p30 = scmp.eq.s32.totalorder %s29, 0
      %s32 = sadd.s32 %s31, 1
      %s33 = scalar_select %p30, %s31, %s32
      %p36 = pneg %p30
      %p37 = scmp.eq.s32.totalorder %s21, 1
      %p38 = por %p36, %p37
      %p39 = scmp.ne.s32.totalorder %s31, %s34
      %p40 = scmp.eq.s32.totalorder %s21, 0
      %p41 = por %p39, %p40
      %p42 = scmp.ne.s32.totalorder %s31, %s34
      %p43 = scmp.eq.s32.totalorder %s26, 1
      %p44 = por %p42, %p43
      %p45 = scmp.ne.s32.totalorder %s34, %s35
      %p46 = scmp.eq.s32.totalorder %s26, 0
      %p47 = por %p45, %p46
      %p48 = scmp.ne.s32.totalorder %s34, %s35
      %p49 = scmp.eq.s32.totalorder %s27, 1
      %p50 = por %p48, %p49
      %p52 = scmp.ne.s32.totalorder %s35, %s51
      %p53 = scmp.eq.s32.totalorder %s27, 0
      %p54 = por %p52, %p53
      %s56 = sadd.s32 %s55, 1
      %p59 = scmp.eq.s32.totalorder %s21, 1
      %p60 = scmp.ne.s32.totalorder %s55, %s57
      %p61 = scmp.eq.s32.totalorder %s21, 0
      %p62 = por %p60, %p61
      %p63 = scmp.ne.s32.totalorder %s55, %s57
      %p64 = scmp.eq.s32.totalorder %s26, 1
      %p65 = por %p63, %p64
      %p66 = scmp.ne.s32.totalorder %s57, %s58
      %p67 = scmp.eq.s32.totalorder %s26, 0
      %p68 = por %p66, %p67
      %p69 = scmp.ne.s32.totalorder %s57, %s58
      %p70 = scmp.eq.s32.totalorder %s27, 1
      %p71 = por %p69, %p70
      %p73 = scmp.ne.s32.totalorder %s58, %s72
      %p74 = scmp.eq.s32.totalorder %s27, 0
      %p75 = por %p73, %p74
      %s76 = ssub.s32 %s21, %s28
      %p77 = scmp.eq.s32.totalorder %s76, 0
      %s79 = sadd.s32 %s78, 1
      %s80 = scalar_select %p77, %s78, %s79
      %p83 = pneg %p77
      %p84 = scmp.eq.s32.totalorder %s21, 1
      %p85 = por %p83, %p84
      %p86 = scmp.ne.s32.totalorder %s78, %s81
      %p87 = scmp.eq.s32.totalorder %s21, 0
      %p88 = por %p86, %p87
      %p89 = scmp.ne.s32.totalorder %s78, %s81
      %p90 = scmp.eq.s32.totalorder %s26, 1
      %p91 = por %p89, %p90
      %p92 = scmp.ne.s32.totalorder %s81, %s82
      %p93 = scmp.eq.s32.totalorder %s26, 0
      %p94 = por %p92, %p93
      %p95 = scmp.ne.s32.totalorder %s81, %s82
      %p96 = scmp.eq.s32.totalorder %s27, 1
      %p97 = por %p95, %p96
      %p99 = scmp.ne.s32.totalorder %s82, %s98
      %p100 = scmp.eq.s32.totalorder %s27, 0
      %p101 = por %p99, %p100
      %s102 = ssub.s32 %s21, %s28
      %p103 = scmp.eq.s32.totalorder %s102, 0
      %s105 = sadd.s32 %s104, 1
      %s106 = scalar_select %p103, %s104, %s105
      %p109 = pneg %p103
      %p110 = scmp.eq.s32.totalorder %s21, 1
      %p111 = por %p109, %p110
      %p112 = scmp.ne.s32.totalorder %s104, %s107
      %p113 = scmp.eq.s32.totalorder %s21, 0
      %p114 = por %p112, %p113
      %p115 = scmp.ne.s32.totalorder %s104, %s107
      %p116 = scmp.eq.s32.totalorder %s26, 1
      %p117 = por %p115, %p116
      %p118 = scmp.ne.s32.totalorder %s107, %s108
      %p119 = scmp.eq.s32.totalorder %s26, 0
      %p120 = por %p118, %p119
      %p121 = scmp.ne.s32.totalorder %s107, %s108
      %p122 = scmp.eq.s32.totalorder %s27, 1
      %p123 = por %p121, %p122
      %p125 = scmp.ne.s32.totalorder %s108, %s124
      %p126 = scmp.eq.s32.totalorder %s27, 0
      %p127 = por %p125, %p126
      %s128 = ssub.s32 %s21, %s28
      %p129 = scmp.eq.s32.totalorder %s128, 0
      %s131 = sadd.s32 %s130, 1
      %s132 = scalar_select %p129, %s130, %s131
      %p135 = pneg %p129
      %p136 = scmp.eq.s32.totalorder %s21, 1
      %p137 = por %p135, %p136
      %p138 = scmp.ne.s32.totalorder %s130, %s133
      %p139 = scmp.eq.s32.totalorder %s21, 0
      %p140 = por %p138, %p139
      %p141 = scmp.ne.s32.totalorder %s130, %s133
      %p142 = scmp.eq.s32.totalorder %s26, 1
      %p143 = por %p141, %p142
      %p144 = scmp.ne.s32.totalorder %s133, %s134
      %p145 = scmp.eq.s32.totalorder %s26, 0
      %p146 = por %p144, %p145
      %p147 = scmp.ne.s32.totalorder %s133, %s134
      %p148 = scmp.eq.s32.totalorder %s27, 1
      %p149 = por %p147, %p148
      %p151 = scmp.ne.s32.totalorder %s134, %s150
      %p152 = scmp.eq.s32.totalorder %s27, 0
      %p153 = por %p151, %p152
      %p154 = scmp.le.s32.totalorder 1, %s21
      %p155 = scmp.lt.s32.totalorder %s21, 3
      %p156 = pnand %p154, %p155
      %p157 = pneg %p156
      // Predicated region
      $region9: #{tpu_custom_call.1} parent=5 // pred_check
        _
      $region10: #{tpu_custom_call.1} parent=5 // pred_check_branch
        %159 = sbr.rel (%p156) target = $region12
      $region11: #{tpu_custom_call.1} parent=5 // pred_region
        %s160 = ssub.s32 %s21, 1
        // Predicated region
        $region13: #{tpu_custom_call.1} parent=11 // pred_check
          %p161 = pneg %p68
        $region14: #{tpu_custom_call.1} parent=11 // pred_check_branch
          %163 = sbr.rel (%p161) target = $region16
        $region15: #{tpu_custom_call.1} parent=11 // pred_region
          %s165 = ssub.s32 2048, 2048
          %166 = vsyncadd [#allocation6], %s165
          %s167 = sshll.u32 [#allocation5], 4
          %s168 = int_to_ptr.vmem [resolvable:$true] %s167
          %173 = dma.hbm_to_vmem [thread:$0]  %s1, 2048, %s168, [#allocation6], 128, 128, 8
        $region16: #{tpu_custom_call.1} parent=11 // pred_fallthru
          _
      $region12: #{tpu_custom_call.1} parent=5 // pred_fallthru
        _
      %p174 = scmp.lt.s32.totalorder %s21, 2
      // Predicated region
      $region17: #{tpu_custom_call.1} parent=5 // pred_check
        %p175 = pneg %p174
      $region18: #{tpu_custom_call.1} parent=5 // pred_check_branch
        %177 = sbr.rel (%p175) target = $region20
      $region19: #{tpu_custom_call.1} parent=5 // pred_region
        // Predicated region
        $region21: #{tpu_custom_call.1} parent=19 // pred_check
          %p178 = pneg %p41
        $region22: #{tpu_custom_call.1} parent=19 // pred_check_branch
          %180 = sbr.rel (%p178) target = $region24
        $region23: #{tpu_custom_call.1} parent=19 // pred_region
          %s181 = sand.u32 %s31, 1
          %s182 = scalar_lea.sflag [#allocation3], %s181
          %s183 = sand.u32 %s31, 1
          %s184 = smul.addr %s183, 256
          %s185 = scalar_lea.vmem [#allocation2], %s184
          %s186 = smul.u32 32, %s21
          %s188 = ssub.s32 4096, 4096
          %189 = vsyncadd %s182, %s188
          %s190 = smul.addr %s186, 128
          %s191 = scalar_lea.hbm %s0, %s190
          %s192 = sshll.u32 %s185, 4
          %s193 = int_to_ptr.vmem [resolvable:$true] %s192
          %198 = dma.hbm_to_vmem [thread:$0]  %s191, 4096, %s193, %s182, 128, 128, 8
        $region24: #{tpu_custom_call.1} parent=19 // pred_fallthru
          _
      $region20: #{tpu_custom_call.1} parent=5 // pred_fallthru
        _
      %p199 = scmp.le.s32.totalorder 1, %s21
      %p200 = scmp.lt.s32.totalorder %s21, 3
      %p201 = pnand %p199, %p200
      %p202 = pneg %p201
      // Predicated region
      $region25: #{tpu_custom_call.1} parent=5 // pred_check
        _
      $region26: #{tpu_custom_call.1} parent=5 // pred_check_branch
        %204 = sbr.rel (%p201) target = $region28
      $region27: #{tpu_custom_call.1} parent=5 // pred_region
        %s205 = ssub.s32 %s21, 1
        %s206 = sand.u32 %s34, 1
        %s207 = scalar_lea.sflag [#allocation3], %s206
        %s208 = sand.u32 %s34, 1
        %s209 = smul.addr %s208, 256
        %s210 = scalar_lea.vmem [#allocation2], %s209
        // Predicated region
        $region29: #{tpu_custom_call.1} parent=27 // pred_check
          %p211 = pneg %p47
        $region30: #{tpu_custom_call.1} parent=27 // pred_check_branch
          %213 = sbr.rel (%p211) target = $region32
        $region31: #{tpu_custom_call.1} parent=27 // pred_region
          %214 = dma.done %s207, 4096
        $region32: #{tpu_custom_call.1} parent=27 // pred_fallthru
          _
        // Predicated region
        $region33: #{tpu_custom_call.1} parent=27 // pred_check
          %p215 = pneg %p68
        $region34: #{tpu_custom_call.1} parent=27 // pred_check_branch
          %217 = sbr.rel (%p215) target = $region36
        $region35: #{tpu_custom_call.1} parent=27 // pred_region
          %218 = dma.done [#allocation6], 2048
        $region36: #{tpu_custom_call.1} parent=27 // pred_fallthru
          _
        %s219 = sand.u32 %s34, 1
        %s220 = scalar_lea.sflag [#allocation3], %s219
        %s221 = sand.u32 %s34, 1
        %s222 = smul.addr %s221, 256
        %s223 = scalar_lea.vmem [#allocation2], %s222
        %p224 = pneg %p47
        %p225 = pneg %p44
        %p226 = pneg %p68
        %p227 = pneg %p65
        %p228 = pneg %p94
        %p229 = pneg %p91
        %s230 = sand.u32 %s81, 1
        %s231 = scalar_lea.sflag [#allocation4], %s230
        %s232 = sand.u32 %s81, 1
        %s233 = smul.addr %s232, 256
        %s234 = scalar_lea.vmem [#allocation7], %s233
        %p235 = pneg %p120
        %p236 = pneg %p117
        %s237 = sand.u32 %s26, 1
        %s238 = scalar_lea.sflag [#allocation9], %s237
        %s239 = sand.u32 %s107, 1
        %s240 = scalar_lea.vmem [#allocation8], %s239
        %p241 = pneg %p146
        %p242 = pneg %p143
        %s243 = sand.u32 %s26, 1
        %s244 = scalar_lea.sflag [#allocation9], %s243
        %s245 = sand.u32 %s133, 1
        %s246 = scalar_lea.vmem [#allocation10], %s245
        %s247 = smul.u32 32, %s26
        %s248 = smul.u32 32, %s26
        %v249 = vld [vmem:[%s210] sm:$0xff]
        %v250 = vld [vmem:[%s210 + $0x8] sm:$0xff]
        %v251 = vld [vmem:[%s210 + $0x10] sm:$0xff]
        %v252 = vld [vmem:[%s210 + $0x18] sm:$0xff]
        %v253 = vld [vmem:[%s210 + $0x20] sm:$0xff]
        %v254 = vld [vmem:[%s210 + $0x28] sm:$0xff]
        %v255 = vld [vmem:[%s210 + $0x30] sm:$0xff]
        %v256 = vld [vmem:[%s210 + $0x38] sm:$0xff]
        %v257 = vld [vmem:[%s210 + $0x40] sm:$0xff]
        %v258 = vld [vmem:[%s210 + $0x48] sm:$0xff]
        %v259 = vld [vmem:[%s210 + $0x50] sm:$0xff]
        %v260 = vld [vmem:[%s210 + $0x58] sm:$0xff]
        %v261 = vld [vmem:[%s210 + $0x60] sm:$0xff]
        %v262 = vld [vmem:[%s210 + $0x68] sm:$0xff]
        %v263 = vld [vmem:[%s210 + $0x70] sm:$0xff]
        %v264 = vld [vmem:[%s210 + $0x78] sm:$0xff]
        %v265 = vld [vmem:[%s210 + $0x80] sm:$0xff]
        %v266 = vld [vmem:[%s210 + $0x88] sm:$0xff]
        %v267 = vld [vmem:[%s210 + $0x90] sm:$0xff]
        %v268 = vld [vmem:[%s210 + $0x98] sm:$0xff]
        %v269 = vld [vmem:[%s210 + $0xa0] sm:$0xff]
        %v270 = vld [vmem:[%s210 + $0xa8] sm:$0xff]
        %v271 = vld [vmem:[%s210 + $0xb0] sm:$0xff]
        %v272 = vld [vmem:[%s210 + $0xb8] sm:$0xff]
        %v273 = vld [vmem:[%s210 + $0xc0] sm:$0xff]
        %v274 = vld [vmem:[%s210 + $0xc8] sm:$0xff]
        %v275 = vld [vmem:[%s210 + $0xd0] sm:$0xff]
        %v276 = vld [vmem:[%s210 + $0xd8] sm:$0xff]
        %v277 = vld [vmem:[%s210 + $0xe0] sm:$0xff]
        %v278 = vld [vmem:[%s210 + $0xe8] sm:$0xff]
        %v279 = vld [vmem:[%s210 + $0xf0] sm:$0xff]
        %v280 = vld [vmem:[%s210 + $0xf8] sm:$0xff]
        %v281 = vmax.f32 %v249, 0.0
        %v282 = vmax.f32 %v250, 0.0
        %v283 = vmax.f32 %v251, 0.0
        %v284 = vmax.f32 %v252, 0.0
        %v285 = vmax.f32 %v253, 0.0
        %v286 = vmax.f32 %v254, 0.0
        %v287 = vmax.f32 %v255, 0.0
        %v288 = vmax.f32 %v256, 0.0
        %v289 = vmax.f32 %v257, 0.0
        %v290 = vmax.f32 %v258, 0.0
        %v291 = vmax.f32 %v259, 0.0
        %v292 = vmax.f32 %v260, 0.0
        %v293 = vmax.f32 %v261, 0.0
        %v294 = vmax.f32 %v262, 0.0
        %v295 = vmax.f32 %v263, 0.0
        %v296 = vmax.f32 %v264, 0.0
        %v297 = vmax.f32 %v265, 0.0
        %v298 = vmax.f32 %v266, 0.0
        %v299 = vmax.f32 %v267, 0.0
        %v300 = vmax.f32 %v268, 0.0
        %v301 = vmax.f32 %v269, 0.0
        %v302 = vmax.f32 %v270, 0.0
        %v303 = vmax.f32 %v271, 0.0
        %v304 = vmax.f32 %v272, 0.0
        %v305 = vmax.f32 %v273, 0.0
        %v306 = vmax.f32 %v274, 0.0
        %v307 = vmax.f32 %v275, 0.0
        %v308 = vmax.f32 %v276, 0.0
        %v309 = vmax.f32 %v277, 0.0
        %v310 = vmax.f32 %v278, 0.0
        %v311 = vmax.f32 %v279, 0.0
        %v312 = vmax.f32 %v280, 0.0
        %v313 = vld [vmem:[#allocation5] sm:$0xff]
        %v314 = vld [vmem:[#allocation5 + $0x8] sm:$0xff]
        %v315 = vld [vmem:[#allocation5 + $0x10] sm:$0xff]
        %v316 = vld [vmem:[#allocation5 + $0x18] sm:$0xff]
        %v317 = vld [vmem:[#allocation5 + $0x20] sm:$0xff]
        %v318 = vld [vmem:[#allocation5 + $0x28] sm:$0xff]
        %v319 = vld [vmem:[#allocation5 + $0x30] sm:$0xff]
        %v320 = vld [vmem:[#allocation5 + $0x38] sm:$0xff]
        %v321 = vld [vmem:[#allocation5 + $0x40] sm:$0xff]
        %v322 = vld [vmem:[#allocation5 + $0x48] sm:$0xff]
        %v323 = vld [vmem:[#allocation5 + $0x50] sm:$0xff]
        %v324 = vld [vmem:[#allocation5 + $0x58] sm:$0xff]
        %v325 = vld [vmem:[#allocation5 + $0x60] sm:$0xff]
        %v326 = vld [vmem:[#allocation5 + $0x68] sm:$0xff]
        %v327 = vld [vmem:[#allocation5 + $0x70] sm:$0xff]
        %v328 = vld [vmem:[#allocation5 + $0x78] sm:$0xff]
        %329 = vmatprep.subr.mxu0 0.0
        %330 = vmatpush1.msra.mxu0 %v313
        %331 = vmatprep.subr.mxu0 0.0
        %332 = vmatpush1.msra.mxu0 %v314
        %333 = vmatprep.subr.mxu0 0.0
        %334 = vmatpush1.msra.mxu0 %v315
        %335 = vmatprep.subr.mxu0 0.0
        %336 = vmatpush1.msra.mxu0 %v316
        %337 = vmatprep.subr.mxu0 0.0
        %338 = vmatpush1.msra.mxu0 %v317
        %339 = vmatprep.subr.mxu0 0.0
        %340 = vmatpush1.msra.mxu0 %v318
        %341 = vmatprep.subr.mxu0 0.0
        %342 = vmatpush1.msra.mxu0 %v319
        %343 = vmatprep.subr.mxu0 0.0
        %344 = vmatpush1.msra.mxu0 %v320
        %345 = vmatprep.subr.mxu0 0.0
        %346 = vmatpush1.msra.mxu0 %v321
        %347 = vmatprep.subr.mxu0 0.0
        %348 = vmatpush1.msra.mxu0 %v322
        %349 = vmatprep.subr.mxu0 0.0
        %350 = vmatpush1.msra.mxu0 %v323
        %351 = vmatprep.subr.mxu0 0.0
        %352 = vmatpush1.msra.mxu0 %v324
        %353 = vmatprep.subr.mxu0 0.0
        %354 = vmatpush1.msra.mxu0 %v325
        %355 = vmatprep.subr.mxu0 0.0
        %356 = vmatpush1.msra.mxu0 %v326
        %357 = vmatprep.subr.mxu0 0.0
        %358 = vmatpush1.msra.mxu0 %v327
        %359 = vmatprep.subr.mxu0 0.0
        %360 = vmatpush1.msra.mxu0 %v328
        %361 = vmatprep.subr.mxu0 0.0
        %362 = vmatpush1.msra.mxu0 0.0
        %363 = vmatprep.subr.mxu0 0.0
        %364 = vmatpush1.msra.mxu0 0.0
        %365 = vmatprep.subr.mxu0 0.0
        %366 = vmatpush1.msra.mxu0 0.0
        %367 = vmatprep.subr.mxu0 0.0
        %368 = vmatpush1.msra.mxu0 0.0
        %369 = vmatprep.subr.mxu0 0.0
        %370 = vmatpush1.msra.mxu0 0.0
        %371 = vmatprep.subr.mxu0 0.0
        %372 = vmatpush1.msra.mxu0 0.0
        %373 = vmatprep.subr.mxu0 0.0
        %374 = vmatpush1.msra.mxu0 0.0
        %375 = vmatprep.subr.mxu0 0.0
        %376 = vmatpush1.msra.mxu0 0.0
        %377 = vmatprep.subr.mxu0 0.0
        %378 = vmatpush1.msra.mxu0 0.0
        %379 = vmatprep.subr.mxu0 0.0
        %380 = vmatpush1.msra.mxu0 0.0
        %381 = vmatprep.subr.mxu0 0.0
        %382 = vmatpush1.msra.mxu0 0.0
        %383 = vmatprep.subr.mxu0 0.0
        %384 = vmatpush1.msra.mxu0 0.0
        %385 = vmatprep.subr.mxu0 0.0
        %386 = vmatpush1.msra.mxu0 0.0
        %387 = vmatprep.subr.mxu0 0.0
        %388 = vmatpush1.msra.mxu0 0.0
        %389 = vmatprep.subr.mxu0 0.0
        %390 = vmatpush1.msra.mxu0 0.0
        %391 = vmatprep.subr.mxu0 0.0
        %392 = vmatpush1.msra.mxu0 0.0
        %393 = vmatprep.mubr.f32.mxu0 0.0
        %394 = vmatmul.mubr.f32.gmra.mrb[0].mxu0 %v281
        %v395 = vpop.f32.mrb[0].mxu0
        %v396 = vadd.f32 0.0, %v395
        %v397 = vpop.f32.mrb[0].mxu0
        %398 = vmatprep.mubr.f32.mxu0 0.0
        %399 = vmatmul.mubr.f32.gmra.mrb[0].mxu0 %v282
        %v400 = vpop.f32.mrb[0].mxu0
        %v401 = vadd.f32 0.0, %v400
        %v402 = vpop.f32.mrb[0].mxu0
        %403 = vmatprep.mubr.f32.mxu0 0.0
        %404 = vmatmul.mubr.f32.gmra.mrb[0].mxu0 %v283
        %v405 = vpop.f32.mrb[0].mxu0
        %v406 = vadd.f32 0.0, %v405
        %v407 = vpop.f32.mrb[0].mxu0
        %408 = vmatprep.mubr.f32.mxu0 0.0
        %409 = vmatmul.mubr.f32.gmra.mrb[0].mxu0 %v284
        %v410 = vpop.f32.mrb[0].mxu0
        %v411 = vadd.f32 0.0, %v410
        %v412 = vpop.f32.mrb[0].mxu0
        %413 = vmatprep.mubr.f32.mxu0 0.0
        %414 = vmatmul.mubr.f32.gmra.mrb[0].mxu0 %v285
        %v415 = vpop.f32.mrb[0].mxu0
        %v416 = vadd.f32 0.0, %v415
        %v417 = vpop.f32.mrb[0].mxu0
        %418 = vmatprep.mubr.f32.mxu0 0.0
        %419 = vmatmul.mubr.f32.gmra.mrb[0].mxu0 %v286
        %v420 = vpop.f32.mrb[0].mxu0
        %v421 = vadd.f32 0.0, %v420
        %v422 = vpop.f32.mrb[0].mxu0
        %423 = vmatprep.mubr.f32.mxu0 0.0
        %424 = vmatmul.mubr.f32.gmra.mrb[0].mxu0 %v287
        %v425 = vpop.f32.mrb[0].mxu0
        %v426 = vadd.f32 0.0, %v425
        %v427 = vpop.f32.mrb[0].mxu0
        %428 = vmatprep.mubr.f32.mxu0 0.0
        %429 = vmatmul.mubr.f32.gmra.mrb[0].mxu0 %v288
        %v430 = vpop.f32.mrb[0].mxu0
        %v431 = vadd.f32 0.0, %v430
        %v432 = vpop.f32.mrb[0].mxu0
        %433 = vmatprep.mubr.f32.mxu0 0.0
        %434 = vmatmul.mubr.f32.gmra.mrb[0].mxu0 %v289
        %v435 = vpop.f32.mrb[0].mxu0
        %v436 = vadd.f32 0.0, %v435
        %v437 = vpop.f32.mrb[0].mxu0
        %438 = vmatprep.mubr.f32.mxu0 0.0
        %439 = vmatmul.mubr.f32.gmra.mrb[0].mxu0 %v290
        %v440 = vpop.f32.mrb[0].mxu0
        %v441 = vadd.f32 0.0, %v440
        %v442 = vpop.f32.mrb[0].mxu0
        %443 = vmatprep.mubr.f32.mxu0 0.0
        %444 = vmatmul.mubr.f32.gmra.mrb[0].mxu0 %v291
        %v445 = vpop.f32.mrb[0].mxu0
        %v446 = vadd.f32 0.0, %v445
        %v447 = vpop.f32.mrb[0].mxu0
        %448 = vmatprep.mubr.f32.mxu0 0.0
        %449 = vmatmul.mubr.f32.gmra.mrb[0].mxu0 %v292
        %v450 = vpop.f32.mrb[0].mxu0
        %v451 = vadd.f32 0.0, %v450
        %v452 = vpop.f32.mrb[0].mxu0
        %453 = vmatprep.mubr.f32.mxu0 0.0
        %454 = vmatmul.mubr.f32.gmra.mrb[0].mxu0 %v293
        %v455 = vpop.f32.mrb[0].mxu0
        %v456 = vadd.f32 0.0, %v455
        %v457 = vpop.f32.mrb[0].mxu0
        %458 = vmatprep.mubr.f32.mxu0 0.0
        %459 = vmatmul.mubr.f32.gmra.mrb[0].mxu0 %v294
        %v460 = vpop.f32.mrb[0].mxu0
        %v461 = vadd.f32 0.0, %v460
        %v462 = vpop.f32.mrb[0].mxu0
        %463 = vmatprep.mubr.f32.mxu0 0.0
        %464 = vmatmul.mubr.f32.gmra.mrb[0].mxu0 %v295
        %v465 = vpop.f32.mrb[0].mxu0
        %v466 = vadd.f32 0.0, %v465
        %v467 = vpop.f32.mrb[0].mxu0
        %468 = vmatprep.mubr.f32.mxu0 0.0
        %469 = vmatmul.mubr.f32.gmra.mrb[0].mxu0 %v296
        %v470 = vpop.f32.mrb[0].mxu0
        %v471 = vadd.f32 0.0, %v470
        %v472 = vpop.f32.mrb[0].mxu0
        %473 = vmatprep.mubr.f32.mxu0 0.0
        %474 = vmatmul.mubr.f32.gmra.mrb[0].mxu0 %v297
        %v475 = vpop.f32.mrb[0].mxu0
        %v476 = vadd.f32 0.0, %v475
        %v477 = vpop.f32.mrb[0].mxu0
        %478 = vmatprep.mubr.f32.mxu0 0.0
        %479 = vmatmul.mubr.f32.gmra.mrb[0].mxu0 %v298
        %v480 = vpop.f32.mrb[0].mxu0
        %v481 = vadd.f32 0.0, %v480
        %v482 = vpop.f32.mrb[0].mxu0
        %483 = vmatprep.mubr.f32.mxu0 0.0
        %484 = vmatmul.mubr.f32.gmra.mrb[0].mxu0 %v299
        %v485 = vpop.f32.mrb[0].mxu0
        %v486 = vadd.f32 0.0, %v485
        %v487 = vpop.f32.mrb[0].mxu0
        %488 = vmatprep.mubr.f32.mxu0 0.0
        %489 = vmatmul.mubr.f32.gmra.mrb[0].mxu0 %v300
        %v490 = vpop.f32.mrb[0].mxu0
        %v491 = vadd.f32 0.0, %v490
        %v492 = vpop.f32.mrb[0].mxu0
        %493 = vmatprep.mubr.f32.mxu0 0.0
        %494 = vmatmul.mubr.f32.gmra.mrb[0].mxu0 %v301
        %v495 = vpop.f32.mrb[0].mxu0
        %v496 = vadd.f32 0.0, %v495
        %v497 = vpop.f32.mrb[0].mxu0
        %498 = vmatprep.mubr.f32.mxu0 0.0
        %499 = vmatmul.mubr.f32.gmra.mrb[0].mxu0 %v302
        %v500 = vpop.f32.mrb[0].mxu0
        %v501 = vadd.f32 0.0, %v500
        %v502 = vpop.f32.mrb[0].mxu0
        %503 = vmatprep.mubr.f32.mxu0 0.0
        %504 = vmatmul.mubr.f32.gmra.mrb[0].mxu0 %v303
        %v505 = vpop.f32.mrb[0].mxu0
        %v506 = vadd.f32 0.0, %v505
        %v507 = vpop.f32.mrb[0].mxu0
        %508 = vmatprep.mubr.f32.mxu0 0.0
        %509 = vmatmul.mubr.f32.gmra.mrb[0].mxu0 %v304
        %v510 = vpop.f32.mrb[0].mxu0
        %v511 = vadd.f32 0.0, %v510
        %v512 = vpop.f32.mrb[0].mxu0
        %513 = vmatprep.mubr.f32.mxu0 0.0
        %514 = vmatmul.mubr.f32.gmra.mrb[0].mxu0 %v305
        %v515 = vpop.f32.mrb[0].mxu0
        %v516 = vadd.f32 0.0, %v515
        %v517 = vpop.f32.mrb[0].mxu0
        %518 = vmatprep.mubr.f32.mxu0 0.0
        %519 = vmatmul.mubr.f32.gmra.mrb[0].mxu0 %v306
        %v520 = vpop.f32.mrb[0].mxu0
        %v521 = vadd.f32 0.0, %v520
        %v522 = vpop.f32.mrb[0].mxu0
        %523 = vmatprep.mubr.f32.mxu0 0.0
        %524 = vmatmul.mubr.f32.gmra.mrb[0].mxu0 %v307
        %v525 = vpop.f32.mrb[0].mxu0
        %v526 = vadd.f32 0.0, %v525
        %v527 = vpop.f32.mrb[0].mxu0
        %528 = vmatprep.mubr.f32.mxu0 0.0
        %529 = vmatmul.mubr.f32.gmra.mrb[0].mxu0 %v308
        %v530 = vpop.f32.mrb[0].mxu0
        %v531 = vadd.f32 0.0, %v530
        %v532 = vpop.f32.mrb[0].mxu0
        %533 = vmatprep.mubr.f32.mxu0 0.0
        %534 = vmatmul.mubr.f32.gmra.mrb[0].mxu0 %v309
        %v535 = vpop.f32.mrb[0].mxu0
        %v536 = vadd.f32 0.0, %v535
        %v537 = vpop.f32.mrb[0].mxu0
        %538 = vmatprep.mubr.f32.mxu0 0.0
        %539 = vmatmul.mubr.f32.gmra.mrb[0].mxu0 %v310
        %v540 = vpop.f32.mrb[0].mxu0
        %v541 = vadd.f32 0.0, %v540
        %v542 = vpop.f32.mrb[0].mxu0
        %543 = vmatprep.mubr.f32.mxu0 0.0
        %544 = vmatmul.mubr.f32.gmra.mrb[0].mxu0 %v311
        %v545 = vpop.f32.mrb[0].mxu0
        %v546 = vadd.f32 0.0, %v545
        %v547 = vpop.f32.mrb[0].mxu0
        %548 = vmatprep.mubr.f32.mxu0 0.0
        %549 = vmatmul.mubr.f32.gmra.mrb[0].mxu0 %v312
        %v550 = vpop.f32.mrb[0].mxu0
        %v551 = vadd.f32 0.0, %v550
        %v552 = vpop.f32.mrb[0].mxu0
        %553 = vdwg.mxu0
        %554 = vst [vmem:[%s234] sm:$0xff] %v396
        %555 = vst [vmem:[%s234 + $0x8] sm:$0xff] %v401
        %556 = vst [vmem:[%s234 + $0x10] sm:$0xff] %v406
        %557 = vst [vmem:[%s234 + $0x18] sm:$0xff] %v411
        %558 = vst [vmem:[%s234 + $0x20] sm:$0xff] %v416
        %559 = vst [vmem:[%s234 + $0x28] sm:$0xff] %v421
        %560 = vst [vmem:[%s234 + $0x30] sm:$0xff] %v426
        %561 = vst [vmem:[%s234 + $0x38] sm:$0xff] %v431
        %562 = vst [vmem:[%s234 + $0x40] sm:$0xff] %v436
        %563 = vst [vmem:[%s234 + $0x48] sm:$0xff] %v441
        %564 = vst [vmem:[%s234 + $0x50] sm:$0xff] %v446
        %565 = vst [vmem:[%s234 + $0x58] sm:$0xff] %v451
        %566 = vst [vmem:[%s234 + $0x60] sm:$0xff] %v456
        %567 = vst [vmem:[%s234 + $0x68] sm:$0xff] %v461
        %568 = vst [vmem:[%s234 + $0x70] sm:$0xff] %v466
        %569 = vst [vmem:[%s234 + $0x78] sm:$0xff] %v471
        %570 = vst [vmem:[%s234 + $0x80] sm:$0xff] %v476
        %571 = vst [vmem:[%s234 + $0x88] sm:$0xff] %v481
        %572 = vst [vmem:[%s234 + $0x90] sm:$0xff] %v486
        %573 = vst [vmem:[%s234 + $0x98] sm:$0xff] %v491
        %574 = vst [vmem:[%s234 + $0xa0] sm:$0xff] %v496
        %575 = vst [vmem:[%s234 + $0xa8] sm:$0xff] %v501
        %576 = vst [vmem:[%s234 + $0xb0] sm:$0xff] %v506
        %577 = vst [vmem:[%s234 + $0xb8] sm:$0xff] %v511
        %578 = vst [vmem:[%s234 + $0xc0] sm:$0xff] %v516
        %579 = vst [vmem:[%s234 + $0xc8] sm:$0xff] %v521
        %580 = vst [vmem:[%s234 + $0xd0] sm:$0xff] %v526
        %581 = vst [vmem:[%s234 + $0xd8] sm:$0xff] %v531
        %582 = vst [vmem:[%s234 + $0xe0] sm:$0xff] %v536
        %583 = vst [vmem:[%s234 + $0xe8] sm:$0xff] %v541
        %584 = vst [vmem:[%s234 + $0xf0] sm:$0xff] %v546
        %585 = vst [vmem:[%s234 + $0xf8] sm:$0xff] %v551
        %v586 = vadd.f32 %v396, %v401
        %v587 = vadd.f32 %v586, %v406
        %v588 = vadd.f32 %v587, %v411
        %v589 = vadd.f32 %v588, %v416
        %v590 = vadd.f32 %v589, %v421
        %v591 = vadd.f32 %v590, %v426
        %v592 = vadd.f32 %v591, %v431
        %v593 = vadd.f32 %v592, %v436
        %v594 = vadd.f32 %v593, %v441
        %v595 = vadd.f32 %v594, %v446
        %v596 = vadd.f32 %v595, %v451
        %v597 = vadd.f32 %v596, %v456
        %v598 = vadd.f32 %v597, %v461
        %v599 = vadd.f32 %v598, %v466
        %v600 = vadd.f32 %v599, %v471
        %v601 = vadd.f32 %v600, %v476
        %v602 = vadd.f32 %v601, %v481
        %v603 = vadd.f32 %v602, %v486
        %v604 = vadd.f32 %v603, %v491
        %v605 = vadd.f32 %v604, %v496
        %v606 = vadd.f32 %v605, %v501
        %v607 = vadd.f32 %v606, %v506
        %v608 = vadd.f32 %v607, %v511
        %v609 = vadd.f32 %v608, %v516
        %v610 = vadd.f32 %v609, %v521
        %v611 = vadd.f32 %v610, %v526
        %v612 = vadd.f32 %v611, %v531
        %v613 = vadd.f32 %v612, %v536
        %v614 = vadd.f32 %v613, %v541
        %v615 = vadd.f32 %v614, %v546
        %v616 = vadd.f32 %v615, %v551
        %v617 = vrot.slane %v616, 4
        %v618 = vadd.f32 %v616, %v617
        %v619 = vrot.slane %v618, 2
        %v620 = vadd.f32 %v618, %v619
        %v621 = vrot.slane %v620, 1
        %v622 = vadd.f32 %v620, %v621
        %623 = vst [vmem:[%s240] sm:$0x1] %v622
        %v624 = vmul.f32 %v396, %v396
        %v625 = vmul.f32 %v401, %v401
        %v626 = vmul.f32 %v406, %v406
        %v627 = vmul.f32 %v411, %v411
        %v628 = vmul.f32 %v416, %v416
        %v629 = vmul.f32 %v421, %v421
        %v630 = vmul.f32 %v426, %v426
        %v631 = vmul.f32 %v431, %v431
        %v632 = vmul.f32 %v436, %v436
        %v633 = vmul.f32 %v441, %v441
        %v634 = vmul.f32 %v446, %v446
        %v635 = vmul.f32 %v451, %v451
        %v636 = vmul.f32 %v456, %v456
        %v637 = vmul.f32 %v461, %v461
        %v638 = vmul.f32 %v466, %v466
        %v639 = vmul.f32 %v471, %v471
        %v640 = vmul.f32 %v476, %v476
        %v641 = vmul.f32 %v481, %v481
        %v642 = vmul.f32 %v486, %v486
        %v643 = vmul.f32 %v491, %v491
        %v644 = vmul.f32 %v496, %v496
        %v645 = vmul.f32 %v501, %v501
        %v646 = vmul.f32 %v506, %v506
        %v647 = vmul.f32 %v511, %v511
        %v648 = vmul.f32 %v516, %v516
        %v649 = vmul.f32 %v521, %v521
        %v650 = vmul.f32 %v526, %v526
        %v651 = vmul.f32 %v531, %v531
        %v652 = vmul.f32 %v536, %v536
        %v653 = vmul.f32 %v541, %v541
        %v654 = vmul.f32 %v546, %v546
        %v655 = vmul.f32 %v551, %v551
        %v656 = vadd.f32 %v624, %v625
        %v657 = vadd.f32 %v656, %v626
        %v658 = vadd.f32 %v657, %v627
        %v659 = vadd.f32 %v658, %v628
        %v660 = vadd.f32 %v659, %v629
        %v661 = vadd.f32 %v660, %v630
        %v662 = vadd.f32 %v661, %v631
        %v663 = vadd.f32 %v662, %v632
        %v664 = vadd.f32 %v663, %v633
        %v665 = vadd.f32 %v664, %v634
        %v666 = vadd.f32 %v665, %v635
        %v667 = vadd.f32 %v666, %v636
        %v668 = vadd.f32 %v667, %v637
        %v669 = vadd.f32 %v668, %v638
        %v670 = vadd.f32 %v669, %v639
        %v671 = vadd.f32 %v670, %v640
        %v672 = vadd.f32 %v671, %v641
        %v673 = vadd.f32 %v672, %v642
        %v674 = vadd.f32 %v673, %v643
        %v675 = vadd.f32 %v674, %v644
        %v676 = vadd.f32 %v675, %v645
        %v677 = vadd.f32 %v676, %v646
        %v678 = vadd.f32 %v677, %v647
        %v679 = vadd.f32 %v678, %v648
        %v680 = vadd.f32 %v679, %v649
        %v681 = vadd.f32 %v680, %v650
        %v682 = vadd.f32 %v681, %v651
        %v683 = vadd.f32 %v682, %v652
        %v684 = vadd.f32 %v683, %v653
        %v685 = vadd.f32 %v684, %v654
        %v686 = vadd.f32 %v685, %v655
        %v687 = vrot.slane %v686, 4
        %v688 = vadd.f32 %v686, %v687
        %v689 = vrot.slane %v688, 2
        %v690 = vadd.f32 %v688, %v689
        %v691 = vrot.slane %v690, 1
        %v692 = vadd.f32 %v690, %v691
        %693 = vst [vmem:[%s246] sm:$0x1] %v692
        %s694 = sand.u32 %s81, 1
        %s695 = scalar_lea.sflag [#allocation4], %s694
        %s696 = sand.u32 %s81, 1
        %s697 = smul.addr %s696, 256
        %s698 = scalar_lea.vmem [#allocation7], %s697
        %s699 = sand.u32 %s26, 1
        %s700 = scalar_lea.sflag [#allocation9], %s699
        %s701 = sand.u32 %s107, 1
        %s702 = scalar_lea.vmem [#allocation8], %s701
        %s703 = sand.u32 %s26, 1
        %s704 = scalar_lea.sflag [#allocation9], %s703
        %s705 = sand.u32 %s133, 1
        %s706 = scalar_lea.vmem [#allocation10], %s705
        // Predicated region
        $region37: #{tpu_custom_call.1} parent=27 // pred_check
          %p707 = pneg %p91
        $region38: #{tpu_custom_call.1} parent=27 // pred_check_branch
          %709 = sbr.rel (%p707) target = $region40
        $region39: #{tpu_custom_call.1} parent=27 // pred_region
          %s710 = smul.u32 32, %s26
          %s712 = ssub.s32 4096, 4096
          %713 = vsyncadd %s695, %s712
          %s714 = smul.addr %s710, 128
          %s715 = scalar_lea.hbm %s2, %s714
          %s716 = sshll.u32 %s698, 4
          %s717 = int_to_ptr.vmem [resolvable:$true] %s716
          %722 = dma.vmem_to_hbm [thread:$0]  %s717, 4096, %s715, %s695, 128, 128, 8
        $region40: #{tpu_custom_call.1} parent=27 // pred_fallthru
          _
        // Predicated region
        $region41: #{tpu_custom_call.1} parent=27 // pred_check
          %p723 = pneg %p117
        $region42: #{tpu_custom_call.1} parent=27 // pred_check_branch
          %725 = sbr.rel (%p723) target = $region44
        $region43: #{tpu_custom_call.1} parent=27 // pred_region
          %s727 = ssub.s32 16, 16
          %728 = vsyncadd %s700, %s727
          %s729 = smul.addr %s26, 16
          %s730 = scalar_lea.hbm %s3, %s729
          %s732 = sshll.u32 %s702, 4
          %s733 = int_to_ptr.vmem [resolvable:$true] %s732
          %735 = dma.vmem_to_hbm [thread:$0]  %s733, 16, %s730, %s700
        $region44: #{tpu_custom_call.1} parent=27 // pred_fallthru
          _
        // Predicated region
        $region45: #{tpu_custom_call.1} parent=27 // pred_check
          %p736 = pneg %p143
        $region46: #{tpu_custom_call.1} parent=27 // pred_check_branch
          %738 = sbr.rel (%p736) target = $region48
        $region47: #{tpu_custom_call.1} parent=27 // pred_region
          %s740 = ssub.s32 16, 16
          %741 = vsyncadd %s704, %s740
          %s742 = smul.addr %s26, 16
          %s743 = scalar_lea.hbm %s4, %s742
          %s745 = sshll.u32 %s706, 4
          %s746 = int_to_ptr.vmem [resolvable:$true] %s745
          %748 = dma.vmem_to_hbm [thread:$0]  %s746, 16, %s743, %s704
        $region48: #{tpu_custom_call.1} parent=27 // pred_fallthru
          _
      $region28: #{tpu_custom_call.1} parent=5 // pred_fallthru
        _
      %p749 = scmp.le.s32.totalorder 2, %s21
      // Predicated region
      $region49: #{tpu_custom_call.1} parent=5 // pred_check
        %p750 = pneg %p749
      $region50: #{tpu_custom_call.1} parent=5 // pred_check_branch
        %752 = sbr.rel (%p750) target = $region52
      $region51: #{tpu_custom_call.1} parent=5 // pred_region
        %s753 = ssub.s32 %s21, 2
        // Predicated region
        $region53: #{tpu_custom_call.1} parent=51 // pred_check
          %p754 = pneg %p97
        $region54: #{tpu_custom_call.1} parent=51 // pred_check_branch
          %756 = sbr.rel (%p754) target = $region56
        $region55: #{tpu_custom_call.1} parent=51 // pred_region
          %s757 = sand.u32 %s82, 1
          %s758 = scalar_lea.sflag [#allocation4], %s757
          %s759 = sand.u32 %s82, 1
          %s760 = smul.addr %s759, 256
          %s761 = scalar_lea.vmem [#allocation7], %s760
          %762 = dma.done %s758, 4096
        $region56: #{tpu_custom_call.1} parent=51 // pred_fallthru
          _
        // Predicated region
        $region57: #{tpu_custom_call.1} parent=51 // pred_check
          %p763 = pneg %p123
        $region58: #{tpu_custom_call.1} parent=51 // pred_check_branch
          %765 = sbr.rel (%p763) target = $region60
        $region59: #{tpu_custom_call.1} parent=51 // pred_region
          %s766 = sand.u32 %s27, 1
          %s767 = scalar_lea.sflag [#allocation9], %s766
          %s768 = sand.u32 %s108, 1
          %s769 = scalar_lea.vmem [#allocation8], %s768
          %770 = dma.done %s767, 16
        $region60: #{tpu_custom_call.1} parent=51 // pred_fallthru
          _
        // Predicated region
        $region61: #{tpu_custom_call.1} parent=51 // pred_check
          %p771 = pneg %p149
        $region62: #{tpu_custom_call.1} parent=51 // pred_check_branch
          %773 = sbr.rel (%p771) target = $region64
        $region63: #{tpu_custom_call.1} parent=51 // pred_region
          %s774 = sand.u32 %s27, 1
          %s775 = scalar_lea.sflag [#allocation9], %s774
          %s776 = sand.u32 %s134, 1
          %s777 = scalar_lea.vmem [#allocation10], %s776
          %778 = dma.done %s775, 16
        $region64: #{tpu_custom_call.1} parent=51 // pred_fallthru
          _
      $region52: #{tpu_custom_call.1} parent=5 // pred_fallthru
        _
    $region6: #{tpu_custom_call.1} parent=1 // loop_footer
      %s25 = sadd.s32 1, %s21
    $region7: #{tpu_custom_call.1} parent=1 // loop_footer_branch
      %20 = sbr.rel target = $region3
    $region8: #{tpu_custom_call.1} parent=1 // loop_exit
      _
    %779 = vsyncpa [#allocation3], 1
    %s780 = scalar_lea.sflag [#allocation3], 1
    %781 = vsyncpa %s780, 1
    %782 = vsyncpa [#allocation6], 1
    %783 = vsyncpa [#allocation4], 1
    %s784 = scalar_lea.sflag [#allocation4], 1
    %785 = vsyncpa %s784, 1
    %786 = vsyncpa [#allocation9], 1
    %s787 = scalar_lea.sflag [#allocation9], 1
    %788 = vsyncpa %s787, 1

</llo_original>
